<compile_context>
chip_gen: v7x
topology: tpu7x:2x2x1
jax: 0.10.0
libtpu: 0.0.40
codegen_flags: <defaults>
</compile_context>

<pallas_src>
import jax
import jax.numpy as jnp
from jax.experimental import pallas as pl
from jax.experimental.pallas import tpu as pltpu


def _bilinear_matrix(in_size: int, out_size: int) -> jnp.ndarray:
    """Dense (out_size, in_size) 1-D bilinear interpolation matrix matching
    PyTorch F.interpolate(mode='bilinear', align_corners=False)."""
    scale = in_size / out_size
    dst = jnp.arange(out_size, dtype=jnp.float32)
    src = (dst + 0.5) * scale - 0.5
    src = jnp.maximum(src, 0.0)                      # PyTorch clamps negatives
    lo = jnp.floor(src).astype(jnp.int32)
    lo = jnp.minimum(lo, in_size - 1)
    hi = jnp.minimum(lo + 1, in_size - 1)
    w_hi = src - lo.astype(jnp.float32)
    w_lo = 1.0 - w_hi
    mat = jnp.zeros((out_size, in_size), jnp.float32)
    rows = jnp.arange(out_size)
    mat = mat.at[rows, lo].add(w_lo)
    mat = mat.at[rows, hi].add(w_hi)
    return mat


def _depth_loss_kernel(pred_ref, tgt_ref, wwt_ref, wh_ref, out_ref, whb_ref):
    b = pl.program_id(1)

    @pl.when(b == 0)
    def _():
        # zero this core's partial-sum block; stage the broadcast Wh once
        out_ref[...] = jnp.zeros_like(out_ref)
        whb_ref[...] = jnp.broadcast_to(wh_ref[...], whb_ref.shape)

    x3 = pred_ref[...]                               # (TB, H_in, W_in), native dtype
    tb, h_in, w_in = x3.shape
    w_out = wwt_ref.shape[1]

    # width interpolation: one flat matmul, M = TB*H_in (lane-dense RHS output)
    x2 = x3.reshape(tb * h_in, w_in)
    y2 = jnp.dot(x2, wwt_ref[...], preferred_element_type=jnp.float32)
    y3 = y2.reshape(tb, h_in, w_out)                 # (TB, H_in, W_out) f32

    # height interpolation: batched matmul with matching batch dims
    z3 = jnp.einsum('boh,bhp->bop', whb_ref[...], y3,
                    preferred_element_type=jnp.float32)   # (TB, H_out, W_out)

    diff = jnp.abs(z3 - tgt_ref[...].astype(jnp.float32))
    # per-lane/sublane partial sums (pure VPU adds); scalar reduce done outside
    out_ref[...] += jnp.sum(diff, axis=0)


def depth_loss(pred: jnp.ndarray, target: jnp.ndarray) -> jnp.ndarray:
    """pred: (N, C, H_in, W_in), target: (N, C, H_out, W_out) -> scalar L1 loss."""
    N, C, H_in, W_in = pred.shape
    Nt, Ct, H_out, W_out = target.shape
    assert (N, C) == (Nt, Ct)
    B = N * C

    pred3 = pred.reshape(B, H_in, W_in)              # free reshape, native dtype
    tgt3 = target.reshape(B, H_out, W_out)

    wh = _bilinear_matrix(H_in, H_out)               # (H_out, H_in), f32
    wwt = _bilinear_matrix(W_in, W_out).T.astype(pred.dtype)   # (W_in, W_out)

    N_PARTIAL = 2                                    # per-core partial sums (v7x)

    # size TB against a conservative VMEM budget (f32 upper bound per slice):
    #   2x double-buffered input blocks + Wh-broadcast scratch + intermediates
    bytes_per_slice = 4 * (2 * H_in * W_in + 2 * H_out * W_out
                           + H_out * H_in + H_in * W_out + 2 * H_out * W_out)
    budget = 16 * 1024 * 1024
    tb_budget = max(8, min(256, budget // bytes_per_slice))
    tb_budget = (tb_budget // 8) * 8
    TB = max(1, min(tb_budget, pl.cdiv(B, N_PARTIAL)))

    B_pad = pl.cdiv(B, N_PARTIAL * TB) * N_PARTIAL * TB
    if B_pad != B:
        # zero padding contributes |0 - 0| = 0 to the sum
        pad = B_pad - B
        pred3 = jnp.concatenate(
            [pred3, jnp.zeros((pad, H_in, W_in), pred3.dtype)], axis=0)
        tgt3 = jnp.concatenate(
            [tgt3, jnp.zeros((pad, H_out, W_out), tgt3.dtype)], axis=0)
    nb = B_pad // (N_PARTIAL * TB)                   # steps per partial group

    partials = pl.pallas_call(
        _depth_loss_kernel,
        out_shape=jax.ShapeDtypeStruct((N_PARTIAL, H_out, W_out), jnp.float32),
        grid_spec=pltpu.PrefetchScalarGridSpec(
            num_scalar_prefetch=0,
            grid=(N_PARTIAL, nb),
            in_specs=[
                pl.BlockSpec((TB, H_in, W_in),
                             lambda p, b: (p * nb + b, 0, 0)),
                pl.BlockSpec((TB, H_out, W_out),
                             lambda p, b: (p * nb + b, 0, 0)),
                pl.BlockSpec((W_in, W_out), lambda p, b: (0, 0)),
                pl.BlockSpec((H_out, H_in), lambda p, b: (0, 0)),
            ],
            out_specs=pl.BlockSpec((None, H_out, W_out),
                                   lambda p, b: (p, 0, 0)),
            scratch_shapes=[pltpu.VMEM((TB, H_out, H_in), jnp.float32)],
        ),
        compiler_params=pltpu.CompilerParams(
            dimension_semantics=("parallel", "arbitrary")),
    )(pred3, tgt3, wwt, wh)

    # tiny final reduction + mean in plain JAX
    return jnp.sum(partials) / jnp.float32(B * H_out * W_out)


if __name__ == "__main__":
    key = jax.random.PRNGKey(0)
    k1, k2 = jax.random.split(key)
    # pred at lower resolution than target (typical depth-head output)
    pred = jax.random.normal(k1, (2, 4, 8, 8), dtype=jnp.float32)
    target = jax.random.normal(k2, (2, 4, 16, 16), dtype=jnp.float32)

    loss = depth_loss(pred, target)
    jax.block_until_ready(loss)

    # pure-JAX reference of the same math (bilinear via the same matrices)
    wh = _bilinear_matrix(8, 16)
    ww = _bilinear_matrix(8, 16)
    p3 = pred.reshape(2 * 4, 8, 8)
    up_ref = jnp.einsum('oh,bhw,pw->bop', wh, p3, ww)
    ref = jnp.mean(jnp.abs(up_ref - target.reshape(2 * 4, 16, 16)))
    assert jnp.allclose(loss, ref, atol=1e-5, rtol=1e-5), (loss, ref)

    print("KERNEL_OK")
</pallas_src>

<mosaic_0001>
module attributes {stable_mosaic.version = 11 : i64} {
  func.func @_depth_loss_kernel(%arg0: i32, %arg1: i32, %arg2: memref<4x8x8xf32, #tpu.memory_space<vmem>>, %arg3: memref<4x16x16xf32, #tpu.memory_space<vmem>>, %arg4: memref<8x16xf32, #tpu.memory_space<vmem>>, %arg5: memref<16x8xf32, #tpu.memory_space<vmem>>, %arg6: memref<1x16x16xf32, #tpu.memory_space<vmem>>, %arg7: memref<4x16x8xf32, #tpu.memory_space<vmem>>) attributes {dimension_semantics = [#tpu.dimension_semantics<parallel>, #tpu.dimension_semantics<arbitrary>], iteration_bounds = array<i64: 2, 1>, scalar_prefetch = 0 : i64, scratch_operands = 1 : i64, tpu.core_type = #tpu.core_type<tc>, window_params = [{transform_indices = @transform_0, window_bounds = array<i64: 4, 8, 8>}, {transform_indices = @transform_1, window_bounds = array<i64: 4, 16, 16>}, {pipeline_mode = #tpu.pipeline_mode<synchronous>, transform_indices = @transform_2, window_bounds = array<i64: 8, 16>}, {pipeline_mode = #tpu.pipeline_mode<synchronous>, transform_indices = @transform_3, window_bounds = array<i64: 16, 8>}, {transform_indices = @transform_4, window_bounds = array<i64: 1, 16, 16>}]} {
    %c0_i32 = arith.constant 0 : i32
    %0 = arith.cmpi eq, %arg1, %c0_i32 : i32
    %1 = arith.extui %0 : i1 to i32
    %c0_i32_0 = arith.constant 0 : i32
    %2 = arith.cmpi ne, %1, %c0_i32_0 : i32
    scf.if %2 {
      %cst_19 = arith.constant 0.000000e+00 : f32
      %20 = vector.broadcast %cst_19 : f32 to vector<16x16xf32>
      %c0_20 = arith.constant 0 : index
      %c0_21 = arith.constant 0 : index
      %c0_22 = arith.constant 0 : index
      %21 = vector.load %arg6[%c0_20, %c0_21, %c0_22] : memref<1x16x16xf32, #tpu.memory_space<vmem>>, vector<1x16x16xf32>
      %22 = vector.shape_cast %21 : vector<1x16x16xf32> to vector<16x16xf32>
      %23 = vector.shape_cast %20 : vector<16x16xf32> to vector<1x16x16xf32>
      tpu.vector_store %arg6[%c0_20, %c0_21, %c0_22], %23 {strides = array<i32>} : memref<1x16x16xf32, #tpu.memory_space<vmem>>, vector<1x16x16xf32>,
      %c0_23 = arith.constant 0 : index
      %c0_24 = arith.constant 0 : index
      %24 = vector.load %arg5[%c0_23, %c0_24] : memref<16x8xf32, #tpu.memory_space<vmem>>, vector<16x8xf32>
      %25 = vector.shape_cast %24 : vector<16x8xf32> to vector<1x16x8xf32>
      %26 = vector.broadcast %25 : vector<1x16x8xf32> to vector<4x16x8xf32>
      %c0_25 = arith.constant 0 : index
      %c0_26 = arith.constant 0 : index
      %c0_27 = arith.constant 0 : index
      %27 = vector.load %arg7[%c0_25, %c0_26, %c0_27] : memref<4x16x8xf32, #tpu.memory_space<vmem>>, vector<4x16x8xf32>
      tpu.vector_store %arg7[%c0_25, %c0_26, %c0_27], %26 {strides = array<i32>} : memref<4x16x8xf32, #tpu.memory_space<vmem>>, vector<4x16x8xf32>,
    } else {
    }
    %c0 = arith.constant 0 : index
    %c0_1 = arith.constant 0 : index
    %c0_2 = arith.constant 0 : index
    %3 = vector.load %arg2[%c0, %c0_1, %c0_2] : memref<4x8x8xf32, #tpu.memory_space<vmem>>, vector<4x8x8xf32>
    %4 = vector.shape_cast %3 : vector<4x8x8xf32> to vector<32x8xf32>
    %c0_3 = arith.constant 0 : index
    %c0_4 = arith.constant 0 : index
    %5 = vector.load %arg4[%c0_3, %c0_4] : memref<8x16xf32, #tpu.memory_space<vmem>>, vector<8x16xf32>
    %cst = arith.constant dense<0.000000e+00> : vector<32x16xf32>
    %6 = tpu.matmul %4, %5, %cst {dimension_numbers = #tpu.dot_dimension_numbers<[1], [0], [0], [1], [0, 0, 1, 1], [], []>} : vector<32x8xf32>, vector<8x16xf32>, vector<32x16xf32> -> vector<32x16xf32>
    %7 = vector.shape_cast %6 : vector<32x16xf32> to vector<4x8x16xf32>
    %c0_5 = arith.constant 0 : index
    %c0_6 = arith.constant 0 : index
    %c0_7 = arith.constant 0 : index
    %8 = vector.load %arg7[%c0_5, %c0_6, %c0_7] : memref<4x16x8xf32, #tpu.memory_space<vmem>>, vector<4x16x8xf32>
    "tpu.trace_start"() <{level = 10 : i32, message = "boh,bhp->bop"}> : () -> ()
    %cst_8 = arith.constant dense<0.000000e+00> : vector<4x16x16xf32>
    %9 = tpu.matmul %8, %7, %cst_8 {dimension_numbers = #tpu.dot_dimension_numbers<[2], [1], [1], [2], [0, 0, 0, 1, 1, 2], [0], [0]>} : vector<4x16x8xf32>, vector<4x8x16xf32>, vector<4x16x16xf32> -> vector<4x16x16xf32>
    "tpu.trace_stop"() : () -> ()
    %c0_9 = arith.constant 0 : index
    %c0_10 = arith.constant 0 : index
    %c0_11 = arith.constant 0 : index
    %10 = vector.load %arg3[%c0_9, %c0_10, %c0_11] : memref<4x16x16xf32, #tpu.memory_space<vmem>>, vector<4x16x16xf32>
    %11 = arith.subf %9, %10 : vector<4x16x16xf32>
    %12 = math.absf %11 : vector<4x16x16xf32>
    %c0_12 = arith.constant 0 : index
    %c0_13 = arith.constant 0 : index
    %c0_14 = arith.constant 0 : index
    %13 = vector.load %arg6[%c0_12, %c0_13, %c0_14] : memref<1x16x16xf32, #tpu.memory_space<vmem>>, vector<1x16x16xf32>
    %14 = vector.shape_cast %13 : vector<1x16x16xf32> to vector<16x16xf32>
    %cst_15 = arith.constant dense<0.000000e+00> : vector<16x16xf32>
    %15 = vector.multi_reduction <add>, %12, %cst_15 [0] : vector<4x16x16xf32> to vector<16x16xf32>
    %16 = arith.addf %14, %15 : vector<16x16xf32>
    %c0_16 = arith.constant 0 : index
    %c0_17 = arith.constant 0 : index
    %c0_18 = arith.constant 0 : index
    %17 = vector.load %arg6[%c0_16, %c0_17, %c0_18] : memref<1x16x16xf32, #tpu.memory_space<vmem>>, vector<1x16x16xf32>
    %18 = vector.shape_cast %17 : vector<1x16x16xf32> to vector<16x16xf32>
    %19 = vector.shape_cast %16 : vector<16x16xf32> to vector<1x16x16xf32>
    tpu.vector_store %arg6[%c0_16, %c0_17, %c0_18], %19 {strides = array<i32>} : memref<1x16x16xf32, #tpu.memory_space<vmem>>, vector<1x16x16xf32>,
    return
  }
  func.func @transform_0(%arg0: i32, %arg1: i32) -> (i32, i32, i32) {
    %c1_i32 = arith.constant 1 : i32
    %0 = arith.muli %arg0, %c1_i32 : i32
    %1 = arith.addi %0, %arg1 : i32
    %c0_i32 = arith.constant 0 : i32
    %c0_i32_0 = arith.constant 0 : i32
    %c0_i32_1 = arith.constant 0 : i32
    return %1, %c0_i32, %c0_i32_0 : i32, i32, i32
  }
  func.func @transform_1(%arg0: i32, %arg1: i32) -> (i32, i32, i32) {
    %c1_i32 = arith.constant 1 : i32
    %0 = arith.muli %arg0, %c1_i32 : i32
    %1 = arith.addi %0, %arg1 : i32
    %c0_i32 = arith.constant 0 : i32
    %c0_i32_0 = arith.constant 0 : i32
    %c0_i32_1 = arith.constant 0 : i32
    return %1, %c0_i32, %c0_i32_0 : i32, i32, i32
  }
  func.func @transform_2(%arg0: i32, %arg1: i32) -> (i32, i32) {
    %c0_i32 = arith.constant 0 : i32
    %c0_i32_0 = arith.constant 0 : i32
    %c0_i32_1 = arith.constant 0 : i32
    return %c0_i32, %c0_i32_0 : i32, i32
  }
  func.func @transform_3(%arg0: i32, %arg1: i32) -> (i32, i32) {
    %c0_i32 = arith.constant 0 : i32
    %c0_i32_0 = arith.constant 0 : i32
    %c0_i32_1 = arith.constant 0 : i32
    return %c0_i32, %c0_i32_0 : i32, i32
  }
  func.func @transform_4(%arg0: i32, %arg1: i32) -> (i32, i32, i32) {
    %c0_i32 = arith.constant 0 : i32
    %c0_i32_0 = arith.constant 0 : i32
    %c0_i32_1 = arith.constant 0 : i32
    return %arg0, %c0_i32, %c0_i32_0 : i32, i32, i32
  }
}

</mosaic_0001>

<llo_original>
// kernel: tpu_custom_call.1
$region0: #{tpu_custom_call.1}
  #allocation0 [shape = 'u32[]', space=smem, size = 0x4, offset = 0x4, fixed_abs, tag = 'smem constant byte address 0x4 - core index']
  #allocation1 [shape = 'u32[144,128]{1,0:T(1,128)}', space=vmem, size = 0x12000, scoped, tag = 'internal scratch']
  #allocation2 [shape = 'f32[4,16,8]{2,1,0:T(8,128)}', space=vmem, size = 0x8000, scoped, tag = 'scratch operand']
  %s0 = inlined_call_operand.hbm [shape: f32[8,8,8], index: 0, kind: input, shape index: {}]
  %s1 = inlined_call_operand.hbm [shape: f32[8,16,16], index: 1, kind: input, shape index: {}]
  %s2 = inlined_call_operand.vmem [shape: f32[8,16], index: 2, kind: input, shape index: {}]
  %s3 = inlined_call_operand.vmem [shape: f32[16,8], index: 3, kind: input, shape index: {}]
  %s4 = inlined_call_operand.hbm [shape: f32[2,16,16], index: 4, kind: output, shape index: {}]
  %s5 = sld [smem:[#allocation0]]
  $region61: #{tpu_custom_call.1} parent=0
    _
  %s7 = ssub.s32 1, %s5
  %s8 = scalar_select 0, %s7, %s5
  $region1: #{tpu_custom_call.1} parent=0
    #allocation3 [shape = 'u8[32768]{0}', space=vmem, size = 0x8000, scoped, tag = 'input window, operand 0']
    #allocation4 [shape = 's32[2]{0}', space=sflag, size = 0x8, scoped, tag = 'scoped memory for tpu_custom_call.1']
    #allocation5 [shape = 's32[2]{0}', space=sflag, size = 0x8, scoped, tag = 'scoped memory for tpu_custom_call.1']
    #allocation6 [shape = 'u8[65536]{0}', space=vmem, size = 0x10000, scoped, tag = 'input window, operand 1']
    #allocation7 [shape = 's32[2]{0}', space=sflag, size = 0x8, scoped, tag = 'scoped memory for tpu_custom_call.1']
    #allocation8 [shape = 'u8[16384]{0}', space=vmem, size = 0x4000, scoped, tag = 'output window, operand 0']
    %9 = vsyncpa [#allocation4], 0
    %s10 = scalar_lea.sflag [#allocation4], 1
    %11 = vsyncpa %s10, 0
    %12 = vsyncpa [#allocation7], 0
    %s13 = scalar_lea.sflag [#allocation7], 1
    %14 = vsyncpa %s13, 0
    %15 = vsyncpa [#allocation5], 0
    %s16 = scalar_lea.sflag [#allocation5], 1
    %17 = vsyncpa %s16, 0
    loop: start=0, step=1, limit=4
    $region2: #{tpu_custom_call.1} parent=1 // loop_pre_header
      _
    $region3: #{tpu_custom_call.1} parent=1 // loop_header
      %s19 = sphi 0, %s23
      %p20 = scmp.ge.s32.totalorder %s19, 4
      %s26 = sphi 0, %s38
      %s27 = sphi 0, %s34
      %s28 = sphi 0, %s26
      %s29 = sphi 0, %s27
      %s30 = sphi 0, %s28
      %s31 = sphi 0, %s29
      %s43 = sphi 0, %s45
      %s46 = sphi 0, %s43
      %s47 = sphi 0, %s46
      %s63 = sphi 0, %s47
      %s71 = sphi 0, %s73
      %s74 = sphi 0, %s71
      %s75 = sphi 0, %s74
      %s91 = sphi 0, %s75
      %s95 = sphi 0, %s95
      %s97 = sphi 0, %s95
      %s98 = sphi 0, %s97
      %s112 = sphi 0, %s98
      %s116 = sphi 0, %s116
      %s118 = sphi 0, %s116
      %s119 = sphi 0, %s118
      %s133 = sphi 0, %s119
      %s139 = sphi 0, %s141
      %s142 = sphi 0, %s139
      %s143 = sphi 0, %s142
      %s159 = sphi 0, %s143
    $region4: #{tpu_custom_call.1} parent=1 // loop_header_branch
      %22 = sbr.rel (%p20) target = $region8
    $region5: #{tpu_custom_call.1} parent=1 // loop_body
      %s24 = ssub.s32 %s19, 1
      %s25 = ssub.s32 %s19, 2
      %s32 = sadd.s32 1, %s27
      %p33 = scmp.ge.s32.totalorder %s32, 1
      %s34 = scalar_select %p33, 0, %s32
      %s35 = sadd.s32 1, %s26
      %s36 = scalar_select %p33, %s35, %s26
      %p37 = scmp.ge.s32.totalorder %s36, 2
      %s38 = scalar_select %p37, 0, %s36
      %s39 = sadd.s32 %s26, %s27
      %s40 = sadd.s32 %s38, %s34
      %s41 = ssub.s32 %s39, %s40
      %p42 = scmp.eq.s32.totalorder %s41, 0
      %s44 = sadd.s32 %s43, 1
      %s45 = scalar_select %p42, %s43, %s44
      %p48 = pneg %p42
      %p49 = scmp.eq.s32.totalorder %s19, 1
      %p50 = por %p48, %p49
      %p51 = scmp.ne.s32.totalorder %s43, %s46
      %p52 = scmp.eq.s32.totalorder %s19, 0
      %p53 = por %p51, %p52
      %p54 = scmp.ne.s32.totalorder %s43, %s46
      %p55 = scmp.eq.s32.totalorder %s24, 1
      %p56 = por %p54, %p55
      %p57 = scmp.ne.s32.totalorder %s46, %s47
      %p58 = scmp.eq.s32.totalorder %s24, 0
      %p59 = por %p57, %p58
      %p60 = scmp.ne.s32.totalorder %s46, %s47
      %p61 = scmp.eq.s32.totalorder %s25, 1
      %p62 = por %p60, %p61
      %p64 = scmp.ne.s32.totalorder %s47, %s63
      %p65 = scmp.eq.s32.totalorder %s25, 0
      %p66 = por %p64, %p65
      %s67 = sadd.s32 %s26, %s27
      %s68 = sadd.s32 %s38, %s34
      %s69 = ssub.s32 %s67, %s68
      %p70 = scmp.eq.s32.totalorder %s69, 0
      %s72 = sadd.s32 %s71, 1
      %s73 = scalar_select %p70, %s71, %s72
      %p76 = pneg %p70
      %p77 = scmp.eq.s32.totalorder %s19, 1
      %p78 = por %p76, %p77
      %p79 = scmp.ne.s32.totalorder %s71, %s74
      %p80 = scmp.eq.s32.totalorder %s19, 0
      %p81 = por %p79, %p80
      %p82 = scmp.ne.s32.totalorder %s71, %s74
      %p83 = scmp.eq.s32.totalorder %s24, 1
      %p84 = por %p82, %p83
      %p85 = scmp.ne.s32.totalorder %s74, %s75
      %p86 = scmp.eq.s32.totalorder %s24, 0
      %p87 = por %p85, %p86
      %p88 = scmp.ne.s32.totalorder %s74, %s75
      %p89 = scmp.eq.s32.totalorder %s25, 1
      %p90 = por %p88, %p89
      %p92 = scmp.ne.s32.totalorder %s75, %s91
      %p93 = scmp.eq.s32.totalorder %s25, 0
      %p94 = por %p92, %p93
      %s96 = sadd.s32 %s95, 1
      %p99 = scmp.eq.s32.totalorder %s19, 1
      %p100 = scmp.ne.s32.totalorder %s95, %s97
      %p101 = scmp.eq.s32.totalorder %s19, 0
      %p102 = por %p100, %p101
      %p103 = scmp.ne.s32.totalorder %s95, %s97
      %p104 = scmp.eq.s32.totalorder %s24, 1
      %p105 = por %p103, %p104
      %p106 = scmp.ne.s32.totalorder %s97, %s98
      %p107 = scmp.eq.s32.totalorder %s24, 0
      %p108 = por %p106, %p107
      %p109 = scmp.ne.s32.totalorder %s97, %s98
      %p110 = scmp.eq.s32.totalorder %s25, 1
      %p111 = por %p109, %p110
      %p113 = scmp.ne.s32.totalorder %s98, %s112
      %p114 = scmp.eq.s32.totalorder %s25, 0
      %p115 = por %p113, %p114
      %s117 = sadd.s32 %s116, 1
      %p120 = scmp.eq.s32.totalorder %s19, 1
      %p121 = scmp.ne.s32.totalorder %s116, %s118
      %p122 = scmp.eq.s32.totalorder %s19, 0
      %p123 = por %p121, %p122
      %p124 = scmp.ne.s32.totalorder %s116, %s118
      %p125 = scmp.eq.s32.totalorder %s24, 1
      %p126 = por %p124, %p125
      %p127 = scmp.ne.s32.totalorder %s118, %s119
      %p128 = scmp.eq.s32.totalorder %s24, 0
      %p129 = por %p127, %p128
      %p130 = scmp.ne.s32.totalorder %s118, %s119
      %p131 = scmp.eq.s32.totalorder %s25, 1
      %p132 = por %p130, %p131
      %p134 = scmp.ne.s32.totalorder %s119, %s133
      %p135 = scmp.eq.s32.totalorder %s25, 0
      %p136 = por %p134, %p135
      %s137 = ssub.s32 %s26, %s38
      %p138 = scmp.eq.s32.totalorder %s137, 0
      %s140 = sadd.s32 %s139, 1
      %s141 = scalar_select %p138, %s139, %s140
      %p144 = pneg %p138
      %p145 = scmp.eq.s32.totalorder %s19, 1
      %p146 = por %p144, %p145
      %p147 = scmp.ne.s32.totalorder %s139, %s142
      %p148 = scmp.eq.s32.totalorder %s19, 0
      %p149 = por %p147, %p148
      %p150 = scmp.ne.s32.totalorder %s139, %s142
      %p151 = scmp.eq.s32.totalorder %s24, 1
      %p152 = por %p150, %p151
      %p153 = scmp.ne.s32.totalorder %s142, %s143
      %p154 = scmp.eq.s32.totalorder %s24, 0
      %p155 = por %p153, %p154
      %p156 = scmp.ne.s32.totalorder %s142, %s143
      %p157 = scmp.eq.s32.totalorder %s25, 1
      %p158 = por %p156, %p157
      %p160 = scmp.ne.s32.totalorder %s143, %s159
      %p161 = scmp.eq.s32.totalorder %s25, 0
      %p162 = por %p160, %p161
      %p163 = scmp.le.s32.totalorder 1, %s19
      %p164 = scmp.lt.s32.totalorder %s19, 3
      %p165 = pnand %p163, %p164
      %p166 = pneg %p165
      // Predicated region
      $region9: #{tpu_custom_call.1} parent=5 // pred_check
        _
      $region10: #{tpu_custom_call.1} parent=5 // pred_check_branch
        %168 = sbr.rel (%p165) target = $region12
      $region11: #{tpu_custom_call.1} parent=5 // pred_region
        %s169 = ssub.s32 %s19, 1
        // Predicated region
        $region13: #{tpu_custom_call.1} parent=11 // pred_check
          %p170 = pneg %p108
        $region14: #{tpu_custom_call.1} parent=11 // pred_check_branch
          %172 = sbr.rel (%p170) target = $region16
        $region15: #{tpu_custom_call.1} parent=11 // pred_region
          _
        $region16: #{tpu_custom_call.1} parent=11 // pred_fallthru
          _
        // Predicated region
        $region17: #{tpu_custom_call.1} parent=11 // pred_check
          %p173 = pneg %p129
        $region18: #{tpu_custom_call.1} parent=11 // pred_check_branch
          %175 = sbr.rel (%p173) target = $region20
        $region19: #{tpu_custom_call.1} parent=11 // pred_region
          _
        $region20: #{tpu_custom_call.1} parent=11 // pred_fallthru
          _
      $region12: #{tpu_custom_call.1} parent=5 // pred_fallthru
        _
      %p176 = scmp.lt.s32.totalorder %s19, 2
      // Predicated region
      $region21: #{tpu_custom_call.1} parent=5 // pred_check
        %p177 = pneg %p176
      $region22: #{tpu_custom_call.1} parent=5 // pred_check_branch
        %179 = sbr.rel (%p177) target = $region24
      $region23: #{tpu_custom_call.1} parent=5 // pred_region
        // Predicated region
        $region25: #{tpu_custom_call.1} parent=23 // pred_check
          %p180 = pneg %p53
        $region26: #{tpu_custom_call.1} parent=23 // pred_check_branch
          %182 = sbr.rel (%p180) target = $region28
        $region27: #{tpu_custom_call.1} parent=23 // pred_region
          %s183 = sand.u32 %s43, 1
          %s184 = scalar_lea.sflag [#allocation4], %s183
          %s185 = sand.u32 %s43, 1
          %s186 = smul.addr %s185, 32
          %s187 = scalar_lea.vmem [#allocation3], %s186
          %s188 = sadd.s32 %s26, %s27
          %s189 = smul.u32 4, %s188
          %s191 = ssub.s32 512, 512
          %192 = vsyncadd %s184, %s191
          %s193 = smul.addr %s189, 128
          %s194 = scalar_lea.hbm %s0, %s193
          %s195 = sshll.u32 %s187, 4
          %s196 = int_to_ptr.vmem [resolvable:$true] %s195
          %201 = dma.hbm_to_vmem [thread:$0]  %s194, 512, %s196, %s184, 128, 128, 8
        $region28: #{tpu_custom_call.1} parent=23 // pred_fallthru
          _
        // Predicated region
        $region29: #{tpu_custom_call.1} parent=23 // pred_check
          %p202 = pneg %p81
        $region30: #{tpu_custom_call.1} parent=23 // pred_check_branch
          %204 = sbr.rel (%p202) target = $region32
        $region31: #{tpu_custom_call.1} parent=23 // pred_region
          %s205 = sand.u32 %s71, 1
          %s206 = scalar_lea.sflag [#allocation7], %s205
          %s207 = sand.u32 %s71, 1
          %s208 = smul.addr %s207, 64
          %s209 = scalar_lea.vmem [#allocation6], %s208
          %s210 = sadd.s32 %s26, %s27
          %s211 = smul.u32 4, %s210
          %s213 = ssub.s32 1024, 1024
          %214 = vsyncadd %s206, %s213
          %s215 = smul.addr %s211, 2
          %s216 = smul.addr %s215, 128
          %s217 = scalar_lea.hbm %s1, %s216
          %s218 = sshll.u32 %s209, 4
          %s219 = int_to_ptr.vmem [resolvable:$true] %s218
          %224 = dma.hbm_to_vmem [thread:$0]  %s217, 1024, %s219, %s206, 128, 128, 8
        $region32: #{tpu_custom_call.1} parent=23 // pred_fallthru
          _
      $region24: #{tpu_custom_call.1} parent=5 // pred_fallthru
        _
      %p225 = scmp.le.s32.totalorder 1, %s19
      %p226 = scmp.lt.s32.totalorder %s19, 3
      %p227 = pnand %p225, %p226
      %p228 = pneg %p227
      // Predicated region
      $region33: #{tpu_custom_call.1} parent=5 // pred_check
        _
      $region34: #{tpu_custom_call.1} parent=5 // pred_check_branch
        %230 = sbr.rel (%p227) target = $region36
      $region35: #{tpu_custom_call.1} parent=5 // pred_region
        %s231 = ssub.s32 %s19, 1
        %s232 = sand.u32 %s46, 1
        %s233 = scalar_lea.sflag [#allocation4], %s232
        %s234 = sand.u32 %s46, 1
        %s235 = smul.addr %s234, 32
        %s236 = scalar_lea.vmem [#allocation3], %s235
        // Predicated region
        $region37: #{tpu_custom_call.1} parent=35 // pred_check
          %p237 = pneg %p59
        $region38: #{tpu_custom_call.1} parent=35 // pred_check_branch
          %239 = sbr.rel (%p237) target = $region40
        $region39: #{tpu_custom_call.1} parent=35 // pred_region
          %240 = dma.done %s233, 512
        $region40: #{tpu_custom_call.1} parent=35 // pred_fallthru
          _
        %s241 = sand.u32 %s74, 1
        %s242 = scalar_lea.sflag [#allocation7], %s241
        %s243 = sand.u32 %s74, 1
        %s244 = smul.addr %s243, 64
        %s245 = scalar_lea.vmem [#allocation6], %s244
        // Predicated region
        $region41: #{tpu_custom_call.1} parent=35 // pred_check
          %p246 = pneg %p87
        $region42: #{tpu_custom_call.1} parent=35 // pred_check_branch
          %248 = sbr.rel (%p246) target = $region44
        $region43: #{tpu_custom_call.1} parent=35 // pred_region
          %249 = dma.done %s242, 1024
        $region44: #{tpu_custom_call.1} parent=35 // pred_fallthru
          _
        %s250 = sand.u32 %s46, 1
        %s251 = scalar_lea.sflag [#allocation4], %s250
        %s252 = sand.u32 %s46, 1
        %s253 = smul.addr %s252, 32
        %s254 = scalar_lea.vmem [#allocation3], %s253
        %p255 = pneg %p59
        %p256 = pneg %p56
        %s257 = sand.u32 %s74, 1
        %s258 = scalar_lea.sflag [#allocation7], %s257
        %s259 = sand.u32 %s74, 1
        %s260 = smul.addr %s259, 64
        %s261 = scalar_lea.vmem [#allocation6], %s260
        %p262 = pneg %p87
        %p263 = pneg %p84
        %p264 = pneg %p108
        %p265 = pneg %p105
        %p266 = pneg %p129
        %p267 = pneg %p126
        %p268 = pneg %p155
        %p269 = pneg %p152
        %s270 = sand.u32 %s142, 1
        %s271 = scalar_lea.sflag [#allocation5], %s270
        %s272 = sand.u32 %s142, 1
        %s273 = smul.addr %s272, 16
        %s274 = scalar_lea.vmem [#allocation8], %s273
        %s275 = sadd.s32 %s28, %s29
        %s276 = smul.u32 4, %s275
        %s277 = sadd.s32 %s28, %s29
        %s278 = smul.u32 4, %s277
        %p279 = scmp.eq.s32.totalorder %s29, 0
        // Predicated region
        $region45: #{tpu_custom_call.1} parent=35 // pred_check
          %p280 = pneg %p279
        $region46: #{tpu_custom_call.1} parent=35 // pred_check_branch
          %282 = sbr.rel (%p280) target = $region48
        $region47: #{tpu_custom_call.1} parent=35 // pred_region
          %vm283 = vcmask 130048
          %284 = vst.msk [vmem:[%s274] sm:$0xff] %vm283, 0.0
          %285 = vst.msk [vmem:[%s274 + $0x8] sm:$0xff] %vm283, 0.0
          %v286 = vld [vmem:[%s3] sm:$0xff]
          %v287 = vld [vmem:[%s3 + $0x8] sm:$0xff]
          %vm288 = vcmask 64512
          %289 = vst.msk [vmem:[#allocation2] sm:$0xff] %vm288, %v286
          %290 = vst.msk [vmem:[#allocation2 + $0x8] sm:$0xff] %vm288, %v287
          %291 = vst.msk [vmem:[#allocation2 + $0x10] sm:$0xff] %vm288, %v286
          %292 = vst.msk [vmem:[#allocation2 + $0x18] sm:$0xff] %vm288, %v287
          %293 = vst.msk [vmem:[#allocation2 + $0x20] sm:$0xff] %vm288, %v286
          %294 = vst.msk [vmem:[#allocation2 + $0x28] sm:$0xff] %vm288, %v287
          %295 = vst.msk [vmem:[#allocation2 + $0x30] sm:$0xff] %vm288, %v286
          %296 = vst.msk [vmem:[#allocation2 + $0x38] sm:$0xff] %vm288, %v287
        $region48: #{tpu_custom_call.1} parent=35 // pred_fallthru
          _
        %v297 = vld [vmem:[%s236] sm:$0xff]
        %v298 = vld [vmem:[%s236 + $0x8] sm:$0xff]
        %v299 = vld [vmem:[%s236 + $0x10] sm:$0xff]
        %v300 = vld [vmem:[%s236 + $0x18] sm:$0xff]
        %v301 = vld [vmem:[%s2] sm:$0xff]
        %vm302 = vcmask 64512
        %v304 = vsel %vm302, %v297, 0
        %v307 = vsel %vm302, %v298, 0
        %v310 = vsel %vm302, %v299, 0
        %v313 = vsel %vm302, %v300, 0
        %315 = vmatprep.subr.mxu0 0.0
        %316 = vmatpush1.msra.mxu0 %v301
        %317 = vmatprep.subr.mxu0 0.0
        %318 = vmatpush1.msra.mxu0 0.0
        %319 = vmatprep.subr.mxu0 0.0
        %320 = vmatpush1.msra.mxu0 0.0
        %321 = vmatprep.subr.mxu0 0.0
        %322 = vmatpush1.msra.mxu0 0.0
        %323 = vmatprep.subr.mxu0 0.0
        %324 = vmatpush1.msra.mxu0 0.0
        %325 = vmatprep.subr.mxu0 0.0
        %326 = vmatpush1.msra.mxu0 0.0
        %327 = vmatprep.subr.mxu0 0.0
        %328 = vmatpush1.msra.mxu0 0.0
        %329 = vmatprep.subr.mxu0 0.0
        %330 = vmatpush1.msra.mxu0 0.0
        %331 = vmatprep.subr.mxu0 0.0
        %332 = vmatpush1.msra.mxu0 0.0
        %333 = vmatprep.subr.mxu0 0.0
        %334 = vmatpush1.msra.mxu0 0.0
        %335 = vmatprep.subr.mxu0 0.0
        %336 = vmatpush1.msra.mxu0 0.0
        %337 = vmatprep.subr.mxu0 0.0
        %338 = vmatpush1.msra.mxu0 0.0
        %339 = vmatprep.subr.mxu0 0.0
        %340 = vmatpush1.msra.mxu0 0.0
        %341 = vmatprep.subr.mxu0 0.0
        %342 = vmatpush1.msra.mxu0 0.0
        %343 = vmatprep.subr.mxu0 0.0
        %344 = vmatpush1.msra.mxu0 0.0
        %345 = vmatprep.subr.mxu0 0.0
        %346 = vmatpush1.msra.mxu0 0.0
        %347 = vmatprep.subr.mxu0 0.0
        %348 = vmatpush1.msra.mxu0 0.0
        %349 = vmatprep.subr.mxu0 0.0
        %350 = vmatpush1.msra.mxu0 0.0
        %351 = vmatprep.subr.mxu0 0.0
        %352 = vmatpush1.msra.mxu0 0.0
        %353 = vmatprep.subr.mxu0 0.0
        %354 = vmatpush1.msra.mxu0 0.0
        %355 = vmatprep.subr.mxu0 0.0
        %356 = vmatpush1.msra.mxu0 0.0
        %357 = vmatprep.subr.mxu0 0.0
        %358 = vmatpush1.msra.mxu0 0.0
        %359 = vmatprep.subr.mxu0 0.0
        %360 = vmatpush1.msra.mxu0 0.0
        %361 = vmatprep.subr.mxu0 0.0
        %362 = vmatpush1.msra.mxu0 0.0
        %363 = vmatprep.subr.mxu0 0.0
        %364 = vmatpush1.msra.mxu0 0.0
        %365 = vmatprep.subr.mxu0 0.0
        %366 = vmatpush1.msra.mxu0 0.0
        %367 = vmatprep.subr.mxu0 0.0
        %368 = vmatpush1.msra.mxu0 0.0
        %369 = vmatprep.subr.mxu0 0.0
        %370 = vmatpush1.msra.mxu0 0.0
        %371 = vmatprep.subr.mxu0 0.0
        %372 = vmatpush1.msra.mxu0 0.0
        %373 = vmatprep.subr.mxu0 0.0
        %374 = vmatpush1.msra.mxu0 0.0
        %375 = vmatprep.subr.mxu0 0.0
        %376 = vmatpush1.msra.mxu0 0.0
        %377 = vmatprep.subr.mxu0 0.0
        %378 = vmatpush1.msra.mxu0 0.0
        %379 = vmatprep.mubr.f32.mxu0 0.0
        %380 = vmatmul.mubr.f32.gmra.mrb[0].mxu0 %v304
        %v381 = vpop.f32.mrb[0].mxu0
        %v382 = vadd.f32 0.0, %v381
        %v383 = vpop.f32.mrb[0].mxu0
        %384 = vmatprep.mubr.f32.mxu0 0.0
        %385 = vmatmul.mubr.f32.gmra.mrb[0].mxu0 %v307
        %v386 = vpop.f32.mrb[0].mxu0
        %v387 = vadd.f32 0.0, %v386
        %v388 = vpop.f32.mrb[0].mxu0
        %389 = vmatprep.mubr.f32.mxu0 0.0
        %390 = vmatmul.mubr.f32.gmra.mrb[0].mxu0 %v310
        %v391 = vpop.f32.mrb[0].mxu0
        %v392 = vadd.f32 0.0, %v391
        %v393 = vpop.f32.mrb[0].mxu0
        %394 = vmatprep.mubr.f32.mxu0 0.0
        %395 = vmatmul.mubr.f32.gmra.mrb[0].mxu0 %v313
        %v396 = vpop.f32.mrb[0].mxu0
        %v397 = vadd.f32 0.0, %v396
        %v398 = vpop.f32.mrb[0].mxu0
        %399 = vdwg.mxu0
        %v400 = vld [vmem:[#allocation2] sm:$0xff]
        %v401 = vld [vmem:[#allocation2 + $0x8] sm:$0xff]
        %v402 = vld [vmem:[#allocation2 + $0x10] sm:$0xff]
        %v403 = vld [vmem:[#allocation2 + $0x18] sm:$0xff]
        %v404 = vld [vmem:[#allocation2 + $0x20] sm:$0xff]
        %v405 = vld [vmem:[#allocation2 + $0x28] sm:$0xff]
        %v406 = vld [vmem:[#allocation2 + $0x30] sm:$0xff]
        %v407 = vld [vmem:[#allocation2 + $0x38] sm:$0xff]
        %v409 = vsel %vm302, %v400, 0
        %v412 = vsel %vm302, %v401, 0
        %414 = vmatprep.subr.mxu0 0.0
        %415 = vmatpush1.msra.mxu0 %v382
        %416 = vmatprep.subr.mxu0 0.0
        %417 = vmatpush1.msra.mxu0 0.0
        %418 = vmatprep.subr.mxu0 0.0
        %419 = vmatpush1.msra.mxu0 0.0
        %420 = vmatprep.subr.mxu0 0.0
        %421 = vmatpush1.msra.mxu0 0.0
        %422 = vmatprep.subr.mxu0 0.0
        %423 = vmatpush1.msra.mxu0 0.0
        %424 = vmatprep.subr.mxu0 0.0
        %425 = vmatpush1.msra.mxu0 0.0
        %426 = vmatprep.subr.mxu0 0.0
        %427 = vmatpush1.msra.mxu0 0.0
        %428 = vmatprep.subr.mxu0 0.0
        %429 = vmatpush1.msra.mxu0 0.0
        %430 = vmatprep.subr.mxu0 0.0
        %431 = vmatpush1.msra.mxu0 0.0
        %432 = vmatprep.subr.mxu0 0.0
        %433 = vmatpush1.msra.mxu0 0.0
        %434 = vmatprep.subr.mxu0 0.0
        %435 = vmatpush1.msra.mxu0 0.0
        %436 = vmatprep.subr.mxu0 0.0
        %437 = vmatpush1.msra.mxu0 0.0
        %438 = vmatprep.subr.mxu0 0.0
        %439 = vmatpush1.msra.mxu0 0.0
        %440 = vmatprep.subr.mxu0 0.0
        %441 = vmatpush1.msra.mxu0 0.0
        %442 = vmatprep.subr.mxu0 0.0
        %443 = vmatpush1.msra.mxu0 0.0
        %444 = vmatprep.subr.mxu0 0.0
        %445 = vmatpush1.msra.mxu0 0.0
        %446 = vmatprep.subr.mxu0 0.0
        %447 = vmatpush1.msra.mxu0 0.0
        %448 = vmatprep.subr.mxu0 0.0
        %449 = vmatpush1.msra.mxu0 0.0
        %450 = vmatprep.subr.mxu0 0.0
        %451 = vmatpush1.msra.mxu0 0.0
        %452 = vmatprep.subr.mxu0 0.0
        %453 = vmatpush1.msra.mxu0 0.0
        %454 = vmatprep.subr.mxu0 0.0
        %455 = vmatpush1.msra.mxu0 0.0
        %456 = vmatprep.subr.mxu0 0.0
        %457 = vmatpush1.msra.mxu0 0.0
        %458 = vmatprep.subr.mxu0 0.0
        %459 = vmatpush1.msra.mxu0 0.0
        %460 = vmatprep.subr.mxu0 0.0
        %461 = vmatpush1.msra.mxu0 0.0
        %462 = vmatprep.subr.mxu0 0.0
        %463 = vmatpush1.msra.mxu0 0.0
        %464 = vmatprep.subr.mxu0 0.0
        %465 = vmatpush1.msra.mxu0 0.0
        %466 = vmatprep.subr.mxu0 0.0
        %467 = vmatpush1.msra.mxu0 0.0
        %468 = vmatprep.subr.mxu0 0.0
        %469 = vmatpush1.msra.mxu0 0.0
        %470 = vmatprep.subr.mxu0 0.0
        %471 = vmatpush1.msra.mxu0 0.0
        %472 = vmatprep.subr.mxu0 0.0
        %473 = vmatpush1.msra.mxu0 0.0
        %474 = vmatprep.subr.mxu0 0.0
        %475 = vmatpush1.msra.mxu0 0.0
        %476 = vmatprep.subr.mxu0 0.0
        %477 = vmatpush1.msra.mxu0 0.0
        %478 = vmatprep.mubr.f32.mxu0 0.0
        %479 = vmatmul.mubr.f32.gmra.mrb[0].mxu0 %v409
        %v480 = vpop.f32.mrb[0].mxu0
        %v481 = vadd.f32 0.0, %v480
        %v482 = vpop.f32.mrb[0].mxu0
        %483 = vmatprep.mubr.f32.mxu0 0.0
        %484 = vmatmul.mubr.f32.gmra.mrb[0].mxu0 %v412
        %v485 = vpop.f32.mrb[0].mxu0
        %v486 = vadd.f32 0.0, %v485
        %v487 = vpop.f32.mrb[0].mxu0
        %488 = vdwg.mxu0
        %v490 = vsel %vm302, %v402, 0
        %v493 = vsel %vm302, %v403, 0
        %495 = vmatprep.subr.mxu0 0.0
        %496 = vmatpush1.msra.mxu0 %v387
        %497 = vmatprep.subr.mxu0 0.0
        %498 = vmatpush1.msra.mxu0 0.0
        %499 = vmatprep.subr.mxu0 0.0
        %500 = vmatpush1.msra.mxu0 0.0
        %501 = vmatprep.subr.mxu0 0.0
        %502 = vmatpush1.msra.mxu0 0.0
        %503 = vmatprep.subr.mxu0 0.0
        %504 = vmatpush1.msra.mxu0 0.0
        %505 = vmatprep.subr.mxu0 0.0
        %506 = vmatpush1.msra.mxu0 0.0
        %507 = vmatprep.subr.mxu0 0.0
        %508 = vmatpush1.msra.mxu0 0.0
        %509 = vmatprep.subr.mxu0 0.0
        %510 = vmatpush1.msra.mxu0 0.0
        %511 = vmatprep.subr.mxu0 0.0
        %512 = vmatpush1.msra.mxu0 0.0
        %513 = vmatprep.subr.mxu0 0.0
        %514 = vmatpush1.msra.mxu0 0.0
        %515 = vmatprep.subr.mxu0 0.0
        %516 = vmatpush1.msra.mxu0 0.0
        %517 = vmatprep.subr.mxu0 0.0
        %518 = vmatpush1.msra.mxu0 0.0
        %519 = vmatprep.subr.mxu0 0.0
        %520 = vmatpush1.msra.mxu0 0.0
        %521 = vmatprep.subr.mxu0 0.0
        %522 = vmatpush1.msra.mxu0 0.0
        %523 = vmatprep.subr.mxu0 0.0
        %524 = vmatpush1.msra.mxu0 0.0
        %525 = vmatprep.subr.mxu0 0.0
        %526 = vmatpush1.msra.mxu0 0.0
        %527 = vmatprep.subr.mxu0 0.0
        %528 = vmatpush1.msra.mxu0 0.0
        %529 = vmatprep.subr.mxu0 0.0
        %530 = vmatpush1.msra.mxu0 0.0
        %531 = vmatprep.subr.mxu0 0.0
        %532 = vmatpush1.msra.mxu0 0.0
        %533 = vmatprep.subr.mxu0 0.0
        %534 = vmatpush1.msra.mxu0 0.0
        %535 = vmatprep.subr.mxu0 0.0
        %536 = vmatpush1.msra.mxu0 0.0
        %537 = vmatprep.subr.mxu0 0.0
        %538 = vmatpush1.msra.mxu0 0.0
        %539 = vmatprep.subr.mxu0 0.0
        %540 = vmatpush1.msra.mxu0 0.0
        %541 = vmatprep.subr.mxu0 0.0
        %542 = vmatpush1.msra.mxu0 0.0
        %543 = vmatprep.subr.mxu0 0.0
        %544 = vmatpush1.msra.mxu0 0.0
        %545 = vmatprep.subr.mxu0 0.0
        %546 = vmatpush1.msra.mxu0 0.0
        %547 = vmatprep.subr.mxu0 0.0
        %548 = vmatpush1.msra.mxu0 0.0
        %549 = vmatprep.subr.mxu0 0.0
        %550 = vmatpush1.msra.mxu0 0.0
        %551 = vmatprep.subr.mxu0 0.0
        %552 = vmatpush1.msra.mxu0 0.0
        %553 = vmatprep.subr.mxu0 0.0
        %554 = vmatpush1.msra.mxu0 0.0
        %555 = vmatprep.subr.mxu0 0.0
        %556 = vmatpush1.msra.mxu0 0.0
        %557 = vmatprep.subr.mxu0 0.0
        %558 = vmatpush1.msra.mxu0 0.0
        %559 = vmatprep.mubr.f32.mxu0 0.0
        %560 = vmatmul.mubr.f32.gmra.mrb[0].mxu0 %v490
        %v561 = vpop.f32.mrb[0].mxu0
        %v562 = vadd.f32 0.0, %v561
        %v563 = vpop.f32.mrb[0].mxu0
        %564 = vmatprep.mubr.f32.mxu0 0.0
        %565 = vmatmul.mubr.f32.gmra.mrb[0].mxu0 %v493
        %v566 = vpop.f32.mrb[0].mxu0
        %v567 = vadd.f32 0.0, %v566
        %v568 = vpop.f32.mrb[0].mxu0
        %569 = vdwg.mxu0
        %v571 = vsel %vm302, %v404, 0
        %v574 = vsel %vm302, %v405, 0
        %576 = vmatprep.subr.mxu0 0.0
        %577 = vmatpush1.msra.mxu0 %v392
        %578 = vmatprep.subr.mxu0 0.0
        %579 = vmatpush1.msra.mxu0 0.0
        %580 = vmatprep.subr.mxu0 0.0
        %581 = vmatpush1.msra.mxu0 0.0
        %582 = vmatprep.subr.mxu0 0.0
        %583 = vmatpush1.msra.mxu0 0.0
        %584 = vmatprep.subr.mxu0 0.0
        %585 = vmatpush1.msra.mxu0 0.0
        %586 = vmatprep.subr.mxu0 0.0
        %587 = vmatpush1.msra.mxu0 0.0
        %588 = vmatprep.subr.mxu0 0.0
        %589 = vmatpush1.msra.mxu0 0.0
        %590 = vmatprep.subr.mxu0 0.0
        %591 = vmatpush1.msra.mxu0 0.0
        %592 = vmatprep.subr.mxu0 0.0
        %593 = vmatpush1.msra.mxu0 0.0
        %594 = vmatprep.subr.mxu0 0.0
        %595 = vmatpush1.msra.mxu0 0.0
        %596 = vmatprep.subr.mxu0 0.0
        %597 = vmatpush1.msra.mxu0 0.0
        %598 = vmatprep.subr.mxu0 0.0
        %599 = vmatpush1.msra.mxu0 0.0
        %600 = vmatprep.subr.mxu0 0.0
        %601 = vmatpush1.msra.mxu0 0.0
        %602 = vmatprep.subr.mxu0 0.0
        %603 = vmatpush1.msra.mxu0 0.0
        %604 = vmatprep.subr.mxu0 0.0
        %605 = vmatpush1.msra.mxu0 0.0
        %606 = vmatprep.subr.mxu0 0.0
        %607 = vmatpush1.msra.mxu0 0.0
        %608 = vmatprep.subr.mxu0 0.0
        %609 = vmatpush1.msra.mxu0 0.0
        %610 = vmatprep.subr.mxu0 0.0
        %611 = vmatpush1.msra.mxu0 0.0
        %612 = vmatprep.subr.mxu0 0.0
        %613 = vmatpush1.msra.mxu0 0.0
        %614 = vmatprep.subr.mxu0 0.0
        %615 = vmatpush1.msra.mxu0 0.0
        %616 = vmatprep.subr.mxu0 0.0
        %617 = vmatpush1.msra.mxu0 0.0
        %618 = vmatprep.subr.mxu0 0.0
        %619 = vmatpush1.msra.mxu0 0.0
        %620 = vmatprep.subr.mxu0 0.0
        %621 = vmatpush1.msra.mxu0 0.0
        %622 = vmatprep.subr.mxu0 0.0
        %623 = vmatpush1.msra.mxu0 0.0
        %624 = vmatprep.subr.mxu0 0.0
        %625 = vmatpush1.msra.mxu0 0.0
        %626 = vmatprep.subr.mxu0 0.0
        %627 = vmatpush1.msra.mxu0 0.0
        %628 = vmatprep.subr.mxu0 0.0
        %629 = vmatpush1.msra.mxu0 0.0
        %630 = vmatprep.subr.mxu0 0.0
        %631 = vmatpush1.msra.mxu0 0.0
        %632 = vmatprep.subr.mxu0 0.0
        %633 = vmatpush1.msra.mxu0 0.0
        %634 = vmatprep.subr.mxu0 0.0
        %635 = vmatpush1.msra.mxu0 0.0
        %636 = vmatprep.subr.mxu0 0.0
        %637 = vmatpush1.msra.mxu0 0.0
        %638 = vmatprep.subr.mxu0 0.0
        %639 = vmatpush1.msra.mxu0 0.0
        %640 = vmatprep.mubr.f32.mxu0 0.0
        %641 = vmatmul.mubr.f32.gmra.mrb[0].mxu0 %v571
        %v642 = vpop.f32.mrb[0].mxu0
        %v643 = vadd.f32 0.0, %v642
        %v644 = vpop.f32.mrb[0].mxu0
        %645 = vmatprep.mubr.f32.mxu0 0.0
        %646 = vmatmul.mubr.f32.gmra.mrb[0].mxu0 %v574
        %v647 = vpop.f32.mrb[0].mxu0
        %v648 = vadd.f32 0.0, %v647
        %v649 = vpop.f32.mrb[0].mxu0
        %650 = vdwg.mxu0
        %v652 = vsel %vm302, %v406, 0
        %v655 = vsel %vm302, %v407, 0
        %657 = vmatprep.subr.mxu0 0.0
        %658 = vmatpush1.msra.mxu0 %v397
        %659 = vmatprep.subr.mxu0 0.0
        %660 = vmatpush1.msra.mxu0 0.0
        %661 = vmatprep.subr.mxu0 0.0
        %662 = vmatpush1.msra.mxu0 0.0
        %663 = vmatprep.subr.mxu0 0.0
        %664 = vmatpush1.msra.mxu0 0.0
        %665 = vmatprep.subr.mxu0 0.0
        %666 = vmatpush1.msra.mxu0 0.0
        %667 = vmatprep.subr.mxu0 0.0
        %668 = vmatpush1.msra.mxu0 0.0
        %669 = vmatprep.subr.mxu0 0.0
        %670 = vmatpush1.msra.mxu0 0.0
        %671 = vmatprep.subr.mxu0 0.0
        %672 = vmatpush1.msra.mxu0 0.0
        %673 = vmatprep.subr.mxu0 0.0
        %674 = vmatpush1.msra.mxu0 0.0
        %675 = vmatprep.subr.mxu0 0.0
        %676 = vmatpush1.msra.mxu0 0.0
        %677 = vmatprep.subr.mxu0 0.0
        %678 = vmatpush1.msra.mxu0 0.0
        %679 = vmatprep.subr.mxu0 0.0
        %680 = vmatpush1.msra.mxu0 0.0
        %681 = vmatprep.subr.mxu0 0.0
        %682 = vmatpush1.msra.mxu0 0.0
        %683 = vmatprep.subr.mxu0 0.0
        %684 = vmatpush1.msra.mxu0 0.0
        %685 = vmatprep.subr.mxu0 0.0
        %686 = vmatpush1.msra.mxu0 0.0
        %687 = vmatprep.subr.mxu0 0.0
        %688 = vmatpush1.msra.mxu0 0.0
        %689 = vmatprep.subr.mxu0 0.0
        %690 = vmatpush1.msra.mxu0 0.0
        %691 = vmatprep.subr.mxu0 0.0
        %692 = vmatpush1.msra.mxu0 0.0
        %693 = vmatprep.subr.mxu0 0.0
        %694 = vmatpush1.msra.mxu0 0.0
        %695 = vmatprep.subr.mxu0 0.0
        %696 = vmatpush1.msra.mxu0 0.0
        %697 = vmatprep.subr.mxu0 0.0
        %698 = vmatpush1.msra.mxu0 0.0
        %699 = vmatprep.subr.mxu0 0.0
        %700 = vmatpush1.msra.mxu0 0.0
        %701 = vmatprep.subr.mxu0 0.0
        %702 = vmatpush1.msra.mxu0 0.0
        %703 = vmatprep.subr.mxu0 0.0
        %704 = vmatpush1.msra.mxu0 0.0
        %705 = vmatprep.subr.mxu0 0.0
        %706 = vmatpush1.msra.mxu0 0.0
        %707 = vmatprep.subr.mxu0 0.0
        %708 = vmatpush1.msra.mxu0 0.0
        %709 = vmatprep.subr.mxu0 0.0
        %710 = vmatpush1.msra.mxu0 0.0
        %711 = vmatprep.subr.mxu0 0.0
        %712 = vmatpush1.msra.mxu0 0.0
        %713 = vmatprep.subr.mxu0 0.0
        %714 = vmatpush1.msra.mxu0 0.0
        %715 = vmatprep.subr.mxu0 0.0
        %716 = vmatpush1.msra.mxu0 0.0
        %717 = vmatprep.subr.mxu0 0.0
        %718 = vmatpush1.msra.mxu0 0.0
        %719 = vmatprep.subr.mxu0 0.0
        %720 = vmatpush1.msra.mxu0 0.0
        %721 = vmatprep.mubr.f32.mxu0 0.0
        %722 = vmatmul.mubr.f32.gmra.mrb[0].mxu0 %v652
        %v723 = vpop.f32.mrb[0].mxu0
        %v724 = vadd.f32 0.0, %v723
        %v725 = vpop.f32.mrb[0].mxu0
        %726 = vmatprep.mubr.f32.mxu0 0.0
        %727 = vmatmul.mubr.f32.gmra.mrb[0].mxu0 %v655
        %v728 = vpop.f32.mrb[0].mxu0
        %v729 = vadd.f32 0.0, %v728
        %v730 = vpop.f32.mrb[0].mxu0
        %731 = vdwg.mxu0
        %v732 = vld [vmem:[%s245] sm:$0xff]
        %v733 = vld [vmem:[%s245 + $0x8] sm:$0xff]
        %v734 = vld [vmem:[%s245 + $0x10] sm:$0xff]
        %v735 = vld [vmem:[%s245 + $0x18] sm:$0xff]
        %v736 = vld [vmem:[%s245 + $0x20] sm:$0xff]
        %v737 = vld [vmem:[%s245 + $0x28] sm:$0xff]
        %v738 = vld [vmem:[%s245 + $0x30] sm:$0xff]
        %v739 = vld [vmem:[%s245 + $0x38] sm:$0xff]
        %v740 = vsub.f32 %v481, %v732
        %v741 = vsub.f32 %v486, %v733
        %v742 = vsub.f32 %v562, %v734
        %v743 = vsub.f32 %v567, %v735
        %v744 = vsub.f32 %v643, %v736
        %v745 = vsub.f32 %v648, %v737
        %v746 = vsub.f32 %v724, %v738
        %v747 = vsub.f32 %v729, %v739
        %v748 = vand.u32 2147483647, %v740
        %v749 = vand.u32 2147483647, %v741
        %v750 = vand.u32 2147483647, %v742
        %v751 = vand.u32 2147483647, %v743
        %v752 = vand.u32 2147483647, %v744
        %v753 = vand.u32 2147483647, %v745
        %v754 = vand.u32 2147483647, %v746
        %v755 = vand.u32 2147483647, %v747
        %v756 = vld [vmem:[%s274] sm:$0xff]
        %v757 = vld [vmem:[%s274 + $0x8] sm:$0xff]
        %vm758 = vcmask 130048
        %v759 = vsel %vm758, %v748, 0.0
        %v760 = vsel %vm758, %v750, 0.0
        %v761 = vadd.f32 %v759, %v760
        %v762 = vsel %vm758, %v752, 0.0
        %v763 = vadd.f32 %v761, %v762
        %v764 = vsel %vm758, %v754, 0.0
        %v765 = vadd.f32 %v763, %v764
        %v766 = vsel %vm758, %v749, 0.0
        %v767 = vsel %vm758, %v751, 0.0
        %v768 = vadd.f32 %v766, %v767
        %v769 = vsel %vm758, %v753, 0.0
        %v770 = vadd.f32 %v768, %v769
        %v771 = vsel %vm758, %v755, 0.0
        %v772 = vadd.f32 %v770, %v771
        %v773 = vadd.f32 %v756, %v765
        %v774 = vadd.f32 %v757, %v772
        %775 = vst.msk [vmem:[%s274] sm:$0xff] %vm758, %v773
        %776 = vst.msk [vmem:[%s274 + $0x8] sm:$0xff] %vm758, %v774
        %s777 = sand.u32 %s142, 1
        %s778 = scalar_lea.sflag [#allocation5], %s777
        %s779 = sand.u32 %s142, 1
        %s780 = smul.addr %s779, 16
        %s781 = scalar_lea.vmem [#allocation8], %s780
        // Predicated region
        $region49: #{tpu_custom_call.1} parent=35 // pred_check
          %p782 = pneg %p152
        $region50: #{tpu_custom_call.1} parent=35 // pred_check_branch
          %784 = sbr.rel (%p782) target = $region52
        $region51: #{tpu_custom_call.1} parent=35 // pred_region
          %s786 = ssub.s32 256, 256
          %787 = vsyncadd %s778, %s786
          %s788 = smul.addr %s28, 2
          %s789 = smul.addr %s788, 128
          %s790 = scalar_lea.hbm %s4, %s789
          %s791 = sshll.u32 %s781, 4
          %s792 = int_to_ptr.vmem [resolvable:$true] %s791
          %797 = dma.vmem_to_hbm [thread:$0]  %s792, 256, %s790, %s778, 128, 128, 8
        $region52: #{tpu_custom_call.1} parent=35 // pred_fallthru
          _
      $region36: #{tpu_custom_call.1} parent=5 // pred_fallthru
        _
      %p798 = scmp.le.s32.totalorder 2, %s19
      // Predicated region
      $region53: #{tpu_custom_call.1} parent=5 // pred_check
        %p799 = pneg %p798
      $region54: #{tpu_custom_call.1} parent=5 // pred_check_branch
        %801 = sbr.rel (%p799) target = $region56
      $region55: #{tpu_custom_call.1} parent=5 // pred_region
        %s802 = ssub.s32 %s19, 2
        // Predicated region
        $region57: #{tpu_custom_call.1} parent=55 // pred_check
          %p803 = pneg %p158
        $region58: #{tpu_custom_call.1} parent=55 // pred_check_branch
          %805 = sbr.rel (%p803) target = $region60
        $region59: #{tpu_custom_call.1} parent=55 // pred_region
          %s806 = sand.u32 %s143, 1
          %s807 = scalar_lea.sflag [#allocation5], %s806
          %s808 = sand.u32 %s143, 1
          %s809 = smul.addr %s808, 16
          %s810 = scalar_lea.vmem [#allocation8], %s809
          %811 = dma.done %s807, 256
        $region60: #{tpu_custom_call.1} parent=55 // pred_fallthru
          _
      $region56: #{tpu_custom_call.1} parent=5 // pred_fallthru
        _
    $region6: #{tpu_custom_call.1} parent=1 // loop_footer
      %s23 = sadd.s32 1, %s19
    $region7: #{tpu_custom_call.1} parent=1 // loop_footer_branch
      %18 = sbr.rel target = $region3
    $region8: #{tpu_custom_call.1} parent=1 // loop_exit
      _
    %812 = vsyncpa [#allocation4], 1
    %s813 = scalar_lea.sflag [#allocation4], 1
    %814 = vsyncpa %s813, 1
    %815 = vsyncpa [#allocation7], 1
    %s816 = scalar_lea.sflag [#allocation7], 1
    %817 = vsyncpa %s816, 1
    %818 = vsyncpa [#allocation5], 1
    %s819 = scalar_lea.sflag [#allocation5], 1
    %820 = vsyncpa %s819, 1

</llo_original>
